<compile_context>
chip_gen: v7x
topology: tpu7x:2x2x1
jax: 0.10.0
libtpu: 0.0.40
codegen_flags: <defaults>
</compile_context>

<pallas_src>
import functools

import jax
import jax.numpy as jnp
from jax.experimental import pallas as pl
from jax.experimental.pallas import tpu as pltpu


HIDDEN = 64       # per-head hidden width of the PyTorch module
H_PAD = 128       # actor(64) | critic(64) hidden packed into one full lane width
OUT_PAD = 128     # lane-dense output row: [actor logits | value | zeros]
BIAS_ROWS = 16    # bias region of the slab (row 0 = b1, row 1 = b2), padded
TB = 8            # timesteps per grid step in the rollout path (f32 sublanes)


def _round_up(x, m):
    return ((x + m - 1) // m) * m


# ----------------------------------------------------------------------------
# Pallas kernel: two bf16 MXU dots (f32 accumulation), VPU bias adds, EUP tanh,
# one lane-dense (B, 128) store. Static slab slices are zero-cost views.
# ----------------------------------------------------------------------------
def _gen_fc_fused_kernel(input_dim, k_pad, x_ref, slab_ref, out_ref):
    # x: (B, input_dim) f32
    # slab: (k_pad + H_PAD + BIAS_ROWS, 128) bf16
    #   rows [0:input_dim]            -> W1  (actor cols 0:64 | critic 64:128)
    #   rows [k_pad:k_pad+128]        -> W2  (block-diagonal actor/critic)
    #   row  k_pad+128                -> b1
    #   row  k_pad+129                -> b2
    # out: (B, 128) f32 = [actor logits | value | zeros]
    x = x_ref[...].astype(jnp.bfloat16)
    w1 = slab_ref[:input_dim, :]
    w2 = slab_ref[k_pad:k_pad + H_PAD, :]
    b1 = slab_ref[k_pad + H_PAD:k_pad + H_PAD + 1, :].astype(jnp.float32)
    b2 = slab_ref[k_pad + H_PAD + 1:k_pad + H_PAD + 2, :].astype(jnp.float32)

    h = jnp.tanh(jnp.dot(x, w1, preferred_element_type=jnp.float32) + b1)
    out_ref[...] = (
        jnp.dot(h.astype(jnp.bfloat16), w2, preferred_element_type=jnp.float32)
        + b2
    )


def _full_spec(shape, n_grid_args=0):
    # Whole-array block (exempt from the (8,128) divisibility rule because the
    # block equals the full array extent).
    if n_grid_args == 0:
        return pl.BlockSpec(shape, lambda: tuple(0 for _ in shape))
    return pl.BlockSpec(shape, lambda *_: tuple(0 for _ in shape))


# ----------------------------------------------------------------------------
# Parameter init (mirrors the PyTorch module's shapes and init scheme)
# ----------------------------------------------------------------------------
def _xavier_uniform(key, out_dim, in_dim):
    limit = jnp.sqrt(6.0 / (in_dim + out_dim)).astype(jnp.float32)
    return jax.random.uniform(key, (out_dim, in_dim), jnp.float32, -limit, limit)


def _linear_bias(key, in_dim, out_dim):
    bound = 1.0 / jnp.sqrt(jnp.float32(in_dim))
    return jax.random.uniform(key, (out_dim,), jnp.float32, -bound, bound)


def init_gen_fc_params(key, input_dim, output_dim, is_val_net):
    keys = jax.random.split(key, 8)
    params = {
        # stored transposed: (in, out) so the kernel computes x @ W
        "aw1": _xavier_uniform(keys[0], 64, input_dim).T,
        "ab1": _linear_bias(keys[1], input_dim, 64),
        "aw2": _xavier_uniform(keys[2], output_dim, 64).T,
        "ab2": _linear_bias(keys[3], 64, output_dim),
    }
    if is_val_net:
        params.update({
            "cw1": _xavier_uniform(keys[4], 64, input_dim).T,
            "cb1": _linear_bias(keys[5], input_dim, 64),
            "cw2": _xavier_uniform(keys[6], 1, 64).T,
            "cb2": _linear_bias(keys[7], 64, 1),
        })
    return params


# ----------------------------------------------------------------------------
# One-time packing: all params into a single resident bf16 slab (one DMA).
# ----------------------------------------------------------------------------
def pack_gen_fc_params(params, input_dim, output_dim, is_val_net):
    assert output_dim + 1 <= OUT_PAD, "widen OUT_PAD for larger action spaces"
    k_pad = _round_up(input_dim, 16)          # 16-row alignment for bf16 tiles
    rows = k_pad + H_PAD + BIAS_ROWS

    slab = jnp.zeros((rows, H_PAD), jnp.float32)
    # W1 (actor | critic side by side along lanes)
    slab = slab.at[:input_dim, :HIDDEN].set(params["aw1"])
    # W2 (block-diagonal: off-diagonal blocks stay exact zeros)
    slab = slab.at[k_pad:k_pad + HIDDEN, :output_dim].set(params["aw2"])
    # biases
    slab = slab.at[k_pad + H_PAD, :HIDDEN].set(params["ab1"])
    slab = slab.at[k_pad + H_PAD + 1, :output_dim].set(params["ab2"])

    if is_val_net:
        slab = slab.at[:input_dim, HIDDEN:2 * HIDDEN].set(params["cw1"])
        slab = slab.at[k_pad + HIDDEN:k_pad + 2 * HIDDEN,
                       output_dim:output_dim + 1].set(params["cw2"])
        slab = slab.at[k_pad + H_PAD, HIDDEN:2 * HIDDEN].set(params["cb1"])
        slab = slab.at[k_pad + H_PAD + 1, output_dim].set(params["cb2"][0])

    return slab.astype(jnp.bfloat16)


# ----------------------------------------------------------------------------
# Per-step forward (mirrors Gen_FC.forward: obs -> (logits (1,1,out), value))
# ----------------------------------------------------------------------------
@functools.partial(jax.jit, static_argnames=("output_dim", "is_val_net"))
def gen_fc_forward(obs, slab, *, output_dim, is_val_net):
    obs = obs.astype(jnp.float32).reshape(1, -1)     # no pad/scatter HLOs
    input_dim = obs.shape[1]
    k_pad = slab.shape[0] - H_PAD - BIAS_ROWS
    kernel = functools.partial(_gen_fc_fused_kernel, input_dim, k_pad)

    out = pl.pallas_call(
        kernel,
        out_shape=jax.ShapeDtypeStruct((1, OUT_PAD), jnp.float32),
        in_specs=[_full_spec(obs.shape), _full_spec(slab.shape)],
        out_specs=_full_spec((1, OUT_PAD)),
    )(obs, slab)

    logits = out[:, :output_dim].reshape(1, 1, output_dim)
    if is_val_net:
        value = out[:, output_dim:output_dim + 1].reshape(1, 1, 1)
        return logits, value
    return logits, None


# ----------------------------------------------------------------------------
# Rollout forward: one pallas_call over T env steps; weights stay VMEM-resident
# across the grid, only obs / output rows stream.
# ----------------------------------------------------------------------------
@functools.partial(jax.jit, static_argnames=("output_dim", "is_val_net"))
def gen_fc_rollout(obs_traj, slab, *, output_dim, is_val_net):
    obs_traj = obs_traj.astype(jnp.float32)
    t_steps, input_dim = obs_traj.shape
    t_pad = _round_up(t_steps, TB)
    if t_pad != t_steps:
        obs_traj = jnp.pad(obs_traj, ((0, t_pad - t_steps), (0, 0)))
    k_pad = slab.shape[0] - H_PAD - BIAS_ROWS
    kernel = functools.partial(_gen_fc_fused_kernel, input_dim, k_pad)

    out = pl.pallas_call(
        kernel,
        out_shape=jax.ShapeDtypeStruct((t_pad, OUT_PAD), jnp.float32),
        grid=(t_pad // TB,),
        in_specs=[pl.BlockSpec((TB, input_dim), lambda t: (t, 0)),
                  pl.BlockSpec(slab.shape, lambda t: (0, 0))],   # resident
        out_specs=pl.BlockSpec((TB, OUT_PAD), lambda t: (t, 0)),
        compiler_params=pltpu.CompilerParams(
            dimension_semantics=("arbitrary",)),
    )(obs_traj, slab)

    logits = out[:t_steps, :output_dim]
    value = out[:t_steps, output_dim:output_dim + 1] if is_val_net else None
    return logits, value


# Pure-JAX reference (unfused f32, matches the PyTorch math).
def _gen_fc_ref(obs, params, is_val_net):
    x = obs.reshape(1, 1, -1).astype(jnp.float32)
    h = jnp.tanh(x @ params["aw1"] + params["ab1"])
    logits = h @ params["aw2"] + params["ab2"]
    value = None
    if is_val_net:
        hc = jnp.tanh(x @ params["cw1"] + params["cb1"])
        value = hc @ params["cw2"] + params["cb2"]
    return logits, value


if __name__ == "__main__":
    input_dim = 32
    output_dim = 8
    T = 8
    ATOL = 4e-2   # bf16 MXU operands vs f32 reference
    RTOL = 4e-2

    key = jax.random.PRNGKey(0)
    pkey, okey, rkey = jax.random.split(key, 3)
    obs = jax.random.normal(okey, (input_dim,), jnp.float32)
    obs_traj = jax.random.normal(rkey, (T, input_dim), jnp.float32)

    # --- valnet = True, per-step forward -------------------------------------
    params = init_gen_fc_params(pkey, input_dim, output_dim, True)
    slab = pack_gen_fc_params(params, input_dim, output_dim, True)
    logits, value = gen_fc_forward(obs, slab, output_dim=output_dim,
                                   is_val_net=True)
    jax.block_until_ready((logits, value))

    ref_logits, ref_value = _gen_fc_ref(obs, params, True)
    assert logits.shape == (1, 1, output_dim)
    assert value.shape == (1, 1, 1)
    assert jnp.allclose(logits, ref_logits, atol=ATOL, rtol=RTOL)
    assert jnp.allclose(value, ref_value, atol=ATOL, rtol=RTOL)

    # --- valnet = True, rollout path (weights resident across the grid) ------
    lgt_t, val_t = gen_fc_rollout(obs_traj, slab, output_dim=output_dim,
                                  is_val_net=True)
    jax.block_until_ready((lgt_t, val_t))
    assert lgt_t.shape == (T, output_dim) and val_t.shape == (T, 1)
    for t in range(T):
        rl, rv = _gen_fc_ref(obs_traj[t], params, True)
        assert jnp.allclose(lgt_t[t], rl[0, 0], atol=ATOL, rtol=RTOL)
        assert jnp.allclose(val_t[t], rv[0, 0], atol=ATOL, rtol=RTOL)

    # --- valnet = False (actor only) ------------------------------------------
    params_a = init_gen_fc_params(pkey, input_dim, output_dim, False)
    slab_a = pack_gen_fc_params(params_a, input_dim, output_dim, False)
    logits_a, value_a = gen_fc_forward(obs, slab_a, output_dim=output_dim,
                                       is_val_net=False)
    jax.block_until_ready(logits_a)

    ref_logits_a, _ = _gen_fc_ref(obs, params_a, False)
    assert value_a is None
    assert logits_a.shape == (1, 1, output_dim)
    assert jnp.allclose(logits_a, ref_logits_a, atol=ATOL, rtol=RTOL)

    print("KERNEL_OK")
</pallas_src>

<mosaic_0001>
module attributes {stable_mosaic.version = 11 : i64} {
  func.func @_gen_fc_fused_kernel(%arg0: memref<1x32xf32, #tpu.memory_space<vmem>>, %arg1: memref<176x128xbf16, #tpu.memory_space<vmem>>, %arg2: memref<1x128xf32, #tpu.memory_space<vmem>>) attributes {dimension_semantics = [], scalar_prefetch = 0 : i64, scratch_operands = 0 : i64, tpu.core_type = #tpu.core_type<tc>} {
    %c0 = arith.constant 0 : index
    %c0_0 = arith.constant 0 : index
    %0 = vector.load %arg0[%c0, %c0_0] : memref<1x32xf32, #tpu.memory_space<vmem>>, vector<1x32xf32>
    %1 = arith.truncf %0 : vector<1x32xf32> to vector<1x32xbf16>
    %c0_1 = arith.constant 0 : index
    %c0_2 = arith.constant 0 : index
    %2 = vector.load %arg1[%c0_1, %c0_2] : memref<176x128xbf16, #tpu.memory_space<vmem>>, vector<32x128xbf16>
    %c32 = arith.constant 32 : index
    %c0_3 = arith.constant 0 : index
    %3 = vector.load %arg1[%c32, %c0_3] : memref<176x128xbf16, #tpu.memory_space<vmem>>, vector<128x128xbf16>
    %c160 = arith.constant 160 : index
    %c0_4 = arith.constant 0 : index
    %4 = vector.load %arg1[%c160, %c0_4] : memref<176x128xbf16, #tpu.memory_space<vmem>>, vector<1x128xbf16>
    %5 = arith.extf %4 : vector<1x128xbf16> to vector<1x128xf32>
    %c161 = arith.constant 161 : index
    %c0_5 = arith.constant 0 : index
    %6 = vector.load %arg1[%c161, %c0_5] : memref<176x128xbf16, #tpu.memory_space<vmem>>, vector<1x128xbf16>
    %7 = arith.extf %6 : vector<1x128xbf16> to vector<1x128xf32>
    %cst = arith.constant dense<0.000000e+00> : vector<1x128xf32>
    %8 = tpu.matmul %1, %2, %cst {dimension_numbers = #tpu.dot_dimension_numbers<[1], [0], [0], [1], [0, 0, 1, 1], [], []>} : vector<1x32xbf16>, vector<32x128xbf16>, vector<1x128xf32> -> vector<1x128xf32>
    %9 = arith.addf %8, %5 : vector<1x128xf32>
    %10 = math.tanh %9 : vector<1x128xf32>
    %11 = arith.truncf %10 : vector<1x128xf32> to vector<1x128xbf16>
    %cst_6 = arith.constant dense<0.000000e+00> : vector<1x128xf32>
    %12 = tpu.matmul %11, %3, %cst_6 {dimension_numbers = #tpu.dot_dimension_numbers<[1], [0], [0], [1], [0, 0, 1, 1], [], []>} : vector<1x128xbf16>, vector<128x128xbf16>, vector<1x128xf32> -> vector<1x128xf32>
    %13 = arith.addf %12, %7 : vector<1x128xf32>
    %c0_7 = arith.constant 0 : index
    %c0_8 = arith.constant 0 : index
    %14 = vector.load %arg2[%c0_7, %c0_8] : memref<1x128xf32, #tpu.memory_space<vmem>>, vector<1x128xf32>
    tpu.vector_store %arg2[%c0_7, %c0_8], %13 {strides = array<i32>} : memref<1x128xf32, #tpu.memory_space<vmem>>, vector<1x128xf32>,
    return
  }
}

</mosaic_0001>

<llo_original>
// kernel: gen_fc_forward.1
$region0: #{gen_fc_forward.1}
  #allocation0 [shape = 'u32[]', space=smem, size = 0x4, offset = 0x4, fixed_abs, tag = 'smem constant byte address 0x4 - core index']
  #allocation1 [shape = 'u32[144,128]{1,0:T(1,128)}', space=vmem, size = 0x12000, scoped, tag = 'internal scratch']
  %s0 = inlined_call_operand.vmem [shape: f32[1,32], index: 0, kind: input, shape index: {}]
  %s1 = inlined_call_operand.hbm [shape: bf16[176,128], index: 1, kind: input, shape index: {}]
  %s2 = inlined_call_operand.vmem [shape: f32[1,128], index: 2, kind: output, shape index: {}]
  %s3 = sld [smem:[#allocation0]]
  $region22: #{gen_fc_forward.1} parent=0
    _
  %s5 = ssub.s32 1, %s3
  %s6 = scalar_select 0, %s5, %s3
  $region1: #{gen_fc_forward.1} parent=0
    #allocation2 [shape = 'u8[45056]{0}', space=vmem, size = 0xb000, scoped, tag = 'input window, operand 1, single buffered']
    #allocation3 [shape = 's32[1]{0}', space=sflag, size = 0x4, scoped, tag = 'scoped memory for gen_fc_forward.1']
    %7 = vsyncpa [#allocation3], 0
    // Predicated region
    $region2: #{gen_fc_forward.1} parent=1 // pred_check
      _
    $region3: #{gen_fc_forward.1} parent=1 // pred_check_branch
      %9 = sbr.rel (0) target = $region5
    $region4: #{gen_fc_forward.1} parent=1 // pred_region
      _
    $region5: #{gen_fc_forward.1} parent=1 // pred_fallthru
      _
    // Predicated region
    $region6: #{gen_fc_forward.1} parent=1 // pred_check
      _
    $region7: #{gen_fc_forward.1} parent=1 // pred_check_branch
      %11 = sbr.rel (0) target = $region9
    $region8: #{gen_fc_forward.1} parent=1 // pred_region
      %s13 = ssub.s32 1408, 1408
      %14 = vsyncadd [#allocation3], %s13
      %s15 = sshll.u32 [#allocation2], 4
      %s16 = int_to_ptr.vmem [resolvable:$true] %s15
      %21 = dma.hbm_to_vmem [thread:$0]  %s1, 1408, %s16, [#allocation3], 64, 64, 4
    $region9: #{gen_fc_forward.1} parent=1 // pred_fallthru
      _
    // Predicated region
    $region10: #{gen_fc_forward.1} parent=1 // pred_check
      _
    $region11: #{gen_fc_forward.1} parent=1 // pred_check_branch
      %23 = sbr.rel (0) target = $region13
    $region12: #{gen_fc_forward.1} parent=1 // pred_region
      %24 = dma.done [#allocation3], 1408
    $region13: #{gen_fc_forward.1} parent=1 // pred_fallthru
      _
    %v26 = vld [vmem:[%s0] sm:$0x1]
    %v27 = vpack.c.bf16 %v26, %v26
    %v28 = vld [vmem:[#allocation2] sm:$0xf]
    %v29 = vld [vmem:[#allocation2 + $0x4] sm:$0xf]
    %v30 = vld [vmem:[#allocation2 + $0x8] sm:$0xf]
    %v31 = vld [vmem:[#allocation2 + $0xc] sm:$0xf]
    %v32 = vld [vmem:[#allocation2 + $0x10] sm:$0xf]
    %v33 = vld [vmem:[#allocation2 + $0x14] sm:$0xf]
    %v34 = vld [vmem:[#allocation2 + $0x18] sm:$0xf]
    %v35 = vld [vmem:[#allocation2 + $0x1c] sm:$0xf]
    %v36 = vld [vmem:[#allocation2 + $0x20] sm:$0xf]
    %v37 = vld [vmem:[#allocation2 + $0x24] sm:$0xf]
    %v38 = vld [vmem:[#allocation2 + $0x28] sm:$0xf]
    %v39 = vld [vmem:[#allocation2 + $0x2c] sm:$0xf]
    %v40 = vld [vmem:[#allocation2 + $0x30] sm:$0xf]
    %v41 = vld [vmem:[#allocation2 + $0x34] sm:$0xf]
    %v42 = vld [vmem:[#allocation2 + $0x38] sm:$0xf]
    %v43 = vld [vmem:[#allocation2 + $0x3c] sm:$0xf]
    %v44 = vld [vmem:[#allocation2 + $0x40] sm:$0xf]
    %v45 = vld [vmem:[#allocation2 + $0x44] sm:$0xf]
    %v46 = vld [vmem:[#allocation2 + $0x48] sm:$0xf]
    %v47 = vld [vmem:[#allocation2 + $0x4c] sm:$0xf]
    %v48 = vld [vmem:[#allocation2 + $0x50] sm:$0x1]
    %v49 = vunpack.c.l.bf16 %v48
    %v54 = vunpack.c.l.b16 %v28
    %v55 = vunpack.c.l.b16 %v29
    %v56 = vunpack.c.l.b16 %v30
    %v57 = vunpack.c.l.b16 %v31
    %v58 = vpack.c.b16 %v55, %v54
    %v59 = vpack.c.b16 %v57, %v56
    %vm62 = vcmask 261120
    %v64 = vsel %vm62, %v27, 0
    %66 = vmatprep.subr.bf16.mxu0 0
    %67 = vmatpush1.bf16.msra.mxu0 %v58
    %68 = vmatprep.subr.bf16.mxu0 0
    %69 = vmatpush1.bf16.msra.mxu0 %v59
    %70 = vmatprep.subr.bf16.mxu0 0
    %71 = vmatpush1.bf16.msra.mxu0 0
    %72 = vmatprep.subr.bf16.mxu0 0
    %73 = vmatpush1.bf16.msra.mxu0 0
    %74 = vmatprep.subr.bf16.mxu0 0
    %75 = vmatpush1.bf16.msra.mxu0 0
    %76 = vmatprep.subr.bf16.mxu0 0
    %77 = vmatpush1.bf16.msra.mxu0 0
    %78 = vmatprep.subr.bf16.mxu0 0
    %79 = vmatpush1.bf16.msra.mxu0 0
    %80 = vmatprep.subr.bf16.mxu0 0
    %81 = vmatpush1.bf16.msra.mxu0 0
    %82 = vmatprep.subr.bf16.mxu0 0
    %83 = vmatpush1.bf16.msra.mxu0 0
    %84 = vmatprep.subr.bf16.mxu0 0
    %85 = vmatpush1.bf16.msra.mxu0 0
    %86 = vmatprep.subr.bf16.mxu0 0
    %87 = vmatpush1.bf16.msra.mxu0 0
    %88 = vmatprep.subr.bf16.mxu0 0
    %89 = vmatpush1.bf16.msra.mxu0 0
    %90 = vmatprep.subr.bf16.mxu0 0
    %91 = vmatpush1.bf16.msra.mxu0 0
    %92 = vmatprep.subr.bf16.mxu0 0
    %93 = vmatpush1.bf16.msra.mxu0 0
    %94 = vmatprep.subr.bf16.mxu0 0
    %95 = vmatpush1.bf16.msra.mxu0 0
    %96 = vmatprep.subr.bf16.mxu0 0
    %97 = vmatpush1.bf16.msra.mxu0 0
    %98 = vmatprep.mubr.bf16.mxu0 0
    %99 = vmatmul.mubr.bf16.gmra.mrb[0].mxu0 %v64
    %v100 = vpop.f32.mrb[0].mxu0
    %v101 = vadd.f32 %v49, %v100
    %v102 = vpop.f32.mrb[0].mxu0
    %v103 = vpop.f32.mrb[0].mxu0
    %v104 = vpop.f32.mrb[0].mxu0
    %105 = vdwg.mxu0
    %v106 = vtanh.pop %v101
    %v107 = vpack.c.bf16 %v106, %v106
    %v124 = vunpack.c.l.b16 %v32
    %v125 = vunpack.c.l.b16 %v33
    %v126 = vunpack.c.l.b16 %v34
    %v127 = vunpack.c.l.b16 %v35
    %v128 = vunpack.c.l.b16 %v36
    %v129 = vunpack.c.l.b16 %v37
    %v130 = vunpack.c.l.b16 %v38
    %v131 = vunpack.c.l.b16 %v39
    %v132 = vunpack.c.l.b16 %v40
    %v133 = vunpack.c.l.b16 %v41
    %v134 = vunpack.c.l.b16 %v42
    %v135 = vunpack.c.l.b16 %v43
    %v136 = vunpack.c.l.b16 %v44
    %v137 = vunpack.c.l.b16 %v45
    %v138 = vunpack.c.l.b16 %v46
    %v139 = vunpack.c.l.b16 %v47
    %v140 = vpack.c.b16 %v125, %v124
    %v141 = vpack.c.b16 %v127, %v126
    %v142 = vpack.c.b16 %v129, %v128
    %v143 = vpack.c.b16 %v131, %v130
    %v144 = vpack.c.b16 %v133, %v132
    %v145 = vpack.c.b16 %v135, %v134
    %v146 = vpack.c.b16 %v137, %v136
    %v147 = vpack.c.b16 %v139, %v138
    %v157 = vrot.slane %v49, 1
    %159 = vmatprep.subr.bf16.mxu0 0
    %160 = vmatpush1.bf16.msra.mxu0 %v140
    %161 = vmatprep.subr.bf16.mxu0 0
    %162 = vmatpush1.bf16.msra.mxu0 %v141
    %163 = vmatprep.subr.bf16.mxu0 0
    %164 = vmatpush1.bf16.msra.mxu0 %v142
    %165 = vmatprep.subr.bf16.mxu0 0
    %166 = vmatpush1.bf16.msra.mxu0 %v143
    %167 = vmatprep.subr.bf16.mxu0 0
    %168 = vmatpush1.bf16.msra.mxu0 %v144
    %169 = vmatprep.subr.bf16.mxu0 0
    %170 = vmatpush1.bf16.msra.mxu0 %v145
    %171 = vmatprep.subr.bf16.mxu0 0
    %172 = vmatpush1.bf16.msra.mxu0 %v146
    %173 = vmatprep.subr.bf16.mxu0 0
    %174 = vmatpush1.bf16.msra.mxu0 %v147
    %175 = vmatprep.subr.bf16.mxu0 0
    %176 = vmatpush1.bf16.msra.mxu0 0
    %177 = vmatprep.subr.bf16.mxu0 0
    %178 = vmatpush1.bf16.msra.mxu0 0
    %179 = vmatprep.subr.bf16.mxu0 0
    %180 = vmatpush1.bf16.msra.mxu0 0
    %181 = vmatprep.subr.bf16.mxu0 0
    %182 = vmatpush1.bf16.msra.mxu0 0
    %183 = vmatprep.subr.bf16.mxu0 0
    %184 = vmatpush1.bf16.msra.mxu0 0
    %185 = vmatprep.subr.bf16.mxu0 0
    %186 = vmatpush1.bf16.msra.mxu0 0
    %187 = vmatprep.subr.bf16.mxu0 0
    %188 = vmatpush1.bf16.msra.mxu0 0
    %189 = vmatprep.subr.bf16.mxu0 0
    %190 = vmatpush1.bf16.msra.mxu0 0
    %191 = vmatprep.mubr.bf16.mxu0 0
    %192 = vmatmul.mubr.bf16.gmra.mrb[0].mxu0 %v107
    %v193 = vpop.f32.mrb[0].mxu0
    %v194 = vadd.f32 %v157, %v193
    %v195 = vpop.f32.mrb[0].mxu0
    %v196 = vpop.f32.mrb[0].mxu0
    %v197 = vpop.f32.mrb[0].mxu0
    %198 = vdwg.mxu0
    %199 = vst [vmem:[%s2] sm:$0x1] %v194
    // Predicated region
    $region14: #{gen_fc_forward.1} parent=1 // pred_check
      _
    $region15: #{gen_fc_forward.1} parent=1 // pred_check_branch
      %201 = sbr.rel (0) target = $region17
    $region16: #{gen_fc_forward.1} parent=1 // pred_region
      _
    $region17: #{gen_fc_forward.1} parent=1 // pred_fallthru
      _
    // Predicated region
    $region18: #{gen_fc_forward.1} parent=1 // pred_check
      _
    $region19: #{gen_fc_forward.1} parent=1 // pred_check_branch
      %203 = sbr.rel (0) target = $region21
    $region20: #{gen_fc_forward.1} parent=1 // pred_region
      _
    $region21: #{gen_fc_forward.1} parent=1 // pred_fallthru
      _
    %204 = vsyncpa [#allocation3], 1

</llo_original>
